<compile_context>
chip_gen: v7x
topology: tpu7x:2x2x1
jax: 0.10.0
libtpu: 0.0.40
codegen_flags: <defaults>
</compile_context>

<pallas_src>
import math

import jax
import jax.numpy as jnp
from jax.experimental import pallas as pl
from jax.experimental.pallas import tpu as pltpu


_OUT_FEATURES = 13 * 4      # 52
_OUT_PAD = 128              # lane-dense padded output width (unmasked vst)
_SUBLANE = 16               # sublane multiple for bf16 blocks
_MAX_TILE = 2048            # spill guard for the live (tile, hidden) f32 intermediates


def _round_up(x, m):
    return ((x + m - 1) // m) * m


def _cdiv(a, b):
    return -(-a // b)


def _default_batch_tile(B):
    """Aim for >= 4 grid steps (pipelining + both v7x TensorCores busy) while
    keeping tiles large enough to amortize the ~0.35 us per-step overhead."""
    B_pad16 = _round_up(B, _SUBLANE)
    tile = _round_up(_cdiv(B, 4), _SUBLANE)
    tile = min(tile, _MAX_TILE, B_pad16)
    return max(tile, _SUBLANE)


def _make_bidnet_kernel(num_linear_layers):
    """Fused kernel: all linear layers + interleaved ReLUs in one body."""

    def kernel(*refs):
        x_ref = refs[0]
        o_ref = refs[-1]
        param_refs = refs[1:-1]  # (w1, b1, w2, b2, ..., wL, bL)

        # x arrives f32 (no wrapper-side cast / extra HBM pass); cast to bf16
        # here so the MXU gets its native input dtype.
        h = x_ref[...].astype(jnp.bfloat16)
        for i in range(num_linear_layers):
            w = param_refs[2 * i][...]        # bf16 (in, out)
            b = param_refs[2 * i + 1][...]    # f32  (1, out) -> broadcasts
            h = jnp.dot(h, w, preferred_element_type=jnp.float32) + b
            if i < num_linear_layers - 1:
                # ReLU, then back to bf16 for the next matmul; accumulation
                # stays f32 via preferred_element_type.
                h = jnp.maximum(h, 0.0).astype(jnp.bfloat16)
        # bf16 output block (halves the dominant writeback HBM stream).
        o_ref[...] = h.astype(o_ref.dtype)

    return kernel


def prepare_bidnet_params(params):
    """One-time param prep (hoisted out of the per-call forward path).

    params: list of (W, b) with W: (in, out) f32, b: (out,) f32.
    Returns a flat tuple (w1, b1, ..., wL, bL) with bf16 weights, f32 biases,
    and the final layer padded to a lane-dense 128-wide output.
    """
    num_linear = len(params)
    out_features = params[-1][0].shape[1]
    assert out_features == _OUT_FEATURES
    flat = []
    for li, (w, b) in enumerate(params):
        w_p = jnp.asarray(w)
        b_p = jnp.asarray(b).reshape(1, -1)
        if li == num_linear - 1:
            pad = _OUT_PAD - out_features
            w_p = jnp.pad(w_p, ((0, 0), (0, pad)))
            b_p = jnp.pad(b_p, ((0, 0), (0, pad)))
        flat.append(w_p.astype(jnp.bfloat16))
        flat.append(b_p.astype(jnp.float32))
    return tuple(flat)


def bidnet_forward(x, flat_params, *, batch_tile=None):
    """Run the BidNet forward pass with a single fused pallas_call.

    x:           (B, input_size) float32
    flat_params: output of prepare_bidnet_params(params)
    """
    B, in_features = x.shape
    num_linear = len(flat_params) // 2
    assert flat_params[-2].shape[1] == _OUT_PAD

    # ---- batch tiling: keep grid >= 4 when the batch allows it so the x DMA
    # and output writeback are pipelined and v7x can use both TensorCores.
    if batch_tile is None:
        batch_tile = _default_batch_tile(B)
    batch_tile = max(_SUBLANE, _round_up(int(batch_tile), _SUBLANE))
    B_pad = _round_up(B, batch_tile)
    grid = B_pad // batch_tile
    assert grid >= 1

    # ---- wrapper-side batch padding only (no dtype cast: kernel casts x).
    x_p = x.astype(jnp.float32)
    if B_pad != B:
        x_p = jnp.pad(x_p, ((0, B_pad - B), (0, 0)))

    in_specs = [pl.BlockSpec((batch_tile, in_features), lambda i: (i, 0))]
    for p in flat_params:
        # Weights / biases are tiny -> full-array blocks, resident across grid.
        in_specs.append(pl.BlockSpec(p.shape, lambda i: (0, 0)))
    out_spec = pl.BlockSpec((batch_tile, _OUT_PAD), lambda i: (i, 0))

    # ---- cheap scheduling hint: the kernel is HBM-bound, tell XLA its cost.
    widths = [in_features] + [flat_params[2 * i].shape[1] for i in range(num_linear)]
    flops = 2 * B_pad * sum(a * b for a, b in zip(widths[:-1], widths[1:]))
    param_bytes = sum(int(p.size) * p.dtype.itemsize for p in flat_params)
    bytes_accessed = int(x_p.size) * 4 + param_bytes + B_pad * _OUT_PAD * 2
    cost = pl.CostEstimate(flops=flops, transcendentals=0,
                           bytes_accessed=bytes_accessed)

    # ---- explicit VMEM budget: double-buffered x tile (f32) + double-buffered
    # bf16 out tile + resident params + headroom for live f32 intermediates.
    # Cap at 48 MiB so the compiler keeps headroom on v7x's 64 MiB VMEM.
    max_hidden = max(widths[1:])
    tile_bytes = (
        2 * batch_tile * in_features * 4      # x block, f32, 2 buffers
        + 2 * batch_tile * _OUT_PAD * 2       # out block, bf16, 2 buffers
        + param_bytes
        + 4 * batch_tile * max_hidden * 4     # intermediate h / spill headroom
    )
    vmem_limit = int(min(48 * 1024 * 1024, max(4 * 1024 * 1024, 2 * tile_bytes)))

    kernel = _make_bidnet_kernel(num_linear)

    out_padded = pl.pallas_call(
        kernel,
        out_shape=jax.ShapeDtypeStruct((B_pad, _OUT_PAD), jnp.bfloat16),
        grid_spec=pltpu.PrefetchScalarGridSpec(
            num_scalar_prefetch=0,
            grid=(grid,),
            in_specs=in_specs,
            out_specs=out_spec,
        ),
        compiler_params=pltpu.CompilerParams(
            dimension_semantics=("parallel",),
            vmem_limit_bytes=vmem_limit,
        ),
        cost_estimate=cost,
    )(x_p, *flat_params)

    # Slice off batch/column padding; return f32 to match the f32 module.
    return out_padded[:B, :_OUT_FEATURES].astype(jnp.float32)


def init_bidnet_params(key, input_size, layer_sizes):
    """Deterministic init mirroring nn.Linear default (U(-1/sqrt(in), 1/sqrt(in)))."""
    sizes = [input_size] + list(layer_sizes) + [13 * 4]
    params = []
    for li in range(len(sizes) - 1):
        fan_in, fan_out = sizes[li], sizes[li + 1]
        key, kw, kb = jax.random.split(key, 3)
        bound = 1.0 / math.sqrt(fan_in)
        w = jax.random.uniform(kw, (fan_in, fan_out), jnp.float32, -bound, bound)
        b = jax.random.uniform(kb, (fan_out,), jnp.float32, -bound, bound)
        params.append((w, b))
    return params


def bidnet_reference(x, params):
    """Pure-JAX f32 reference for correctness checking."""
    h = x
    n = len(params)
    for i, (w, b) in enumerate(params):
        h = h @ w + b
        if i < n - 1:
            h = jnp.maximum(h, 0.0)
    return h


if __name__ == "__main__":
    key = jax.random.PRNGKey(0)
    k_params, k_x = jax.random.split(key)

    # Small, module-consistent shapes: MLP on flat feature vectors.
    # batch=50 is deliberately NOT a multiple of the tile -> exercises the
    # pad/slice path; the default tile heuristic yields tile=16, grid=4
    # -> multi-step parallel grid (pipelining + megacore path covered).
    input_size = 32
    layer_sizes = [64, 32]
    batch = 50

    params = init_bidnet_params(k_params, input_size, layer_sizes)
    flat_params = prepare_bidnet_params(params)   # prepared ONCE, reused per call
    x = jax.random.normal(k_x, (batch, input_size), jnp.float32)

    out = bidnet_forward(x, flat_params)
    out = jax.block_until_ready(out)

    ref = bidnet_reference(x, params)
    assert out.shape == (batch, 13 * 4), out.shape
    # bf16 matmul inputs + bf16 output writeback, f32 accumulation -> loose
    # tolerance vs the f32 reference.
    err = float(jnp.max(jnp.abs(out - ref)))
    assert err < 5e-2, err

    print("KERNEL_OK")
</pallas_src>

<mosaic_0001>
module attributes {stable_mosaic.version = 11 : i64} {
  func.func @kernel(%arg0: i32, %arg1: memref<16x32xf32, #tpu.memory_space<vmem>>, %arg2: memref<32x64xbf16, #tpu.memory_space<vmem>>, %arg3: memref<1x64xf32, #tpu.memory_space<vmem>>, %arg4: memref<64x32xbf16, #tpu.memory_space<vmem>>, %arg5: memref<1x32xf32, #tpu.memory_space<vmem>>, %arg6: memref<32x128xbf16, #tpu.memory_space<vmem>>, %arg7: memref<1x128xf32, #tpu.memory_space<vmem>>, %arg8: memref<16x128xbf16, #tpu.memory_space<vmem>>) attributes {dimension_semantics = [#tpu.dimension_semantics<parallel>], iteration_bounds = array<i64: 4>, scalar_prefetch = 0 : i64, scratch_operands = 0 : i64, tpu.core_type = #tpu.core_type<tc>, window_params = [{transform_indices = @transform_0, window_bounds = array<i64: 16, 32>}, {pipeline_mode = #tpu.pipeline_mode<synchronous>, transform_indices = @transform_1, window_bounds = array<i64: 32, 64>}, {pipeline_mode = #tpu.pipeline_mode<synchronous>, transform_indices = @transform_2, window_bounds = array<i64: 1, 64>}, {pipeline_mode = #tpu.pipeline_mode<synchronous>, transform_indices = @transform_3, window_bounds = array<i64: 64, 32>}, {pipeline_mode = #tpu.pipeline_mode<synchronous>, transform_indices = @transform_4, window_bounds = array<i64: 1, 32>}, {pipeline_mode = #tpu.pipeline_mode<synchronous>, transform_indices = @transform_5, window_bounds = array<i64: 32, 128>}, {pipeline_mode = #tpu.pipeline_mode<synchronous>, transform_indices = @transform_6, window_bounds = array<i64: 1, 128>}, {transform_indices = @transform_7, window_bounds = array<i64: 16, 128>}]} {
    %c0 = arith.constant 0 : index
    %c0_0 = arith.constant 0 : index
    %0 = vector.load %arg1[%c0, %c0_0] : memref<16x32xf32, #tpu.memory_space<vmem>>, vector<16x32xf32>
    %1 = arith.truncf %0 : vector<16x32xf32> to vector<16x32xbf16>
    %c0_1 = arith.constant 0 : index
    %c0_2 = arith.constant 0 : index
    %2 = vector.load %arg2[%c0_1, %c0_2] : memref<32x64xbf16, #tpu.memory_space<vmem>>, vector<32x64xbf16>
    %c0_3 = arith.constant 0 : index
    %c0_4 = arith.constant 0 : index
    %3 = vector.load %arg3[%c0_3, %c0_4] : memref<1x64xf32, #tpu.memory_space<vmem>>, vector<1x64xf32>
    %cst = arith.constant dense<0.000000e+00> : vector<16x64xf32>
    %4 = tpu.matmul %1, %2, %cst {dimension_numbers = #tpu.dot_dimension_numbers<[1], [0], [0], [1], [0, 0, 1, 1], [], []>} : vector<16x32xbf16>, vector<32x64xbf16>, vector<16x64xf32> -> vector<16x64xf32>
    %5 = vector.broadcast %3 : vector<1x64xf32> to vector<16x64xf32>
    %6 = arith.addf %4, %5 : vector<16x64xf32>
    %cst_5 = arith.constant 0.000000e+00 : f32
    %7 = vector.broadcast %cst_5 : f32 to vector<16x64xf32>
    %8 = arith.maximumf %6, %7 : vector<16x64xf32>
    %9 = arith.truncf %8 : vector<16x64xf32> to vector<16x64xbf16>
    %c0_6 = arith.constant 0 : index
    %c0_7 = arith.constant 0 : index
    %10 = vector.load %arg4[%c0_6, %c0_7] : memref<64x32xbf16, #tpu.memory_space<vmem>>, vector<64x32xbf16>
    %c0_8 = arith.constant 0 : index
    %c0_9 = arith.constant 0 : index
    %11 = vector.load %arg5[%c0_8, %c0_9] : memref<1x32xf32, #tpu.memory_space<vmem>>, vector<1x32xf32>
    %cst_10 = arith.constant dense<0.000000e+00> : vector<16x32xf32>
    %12 = tpu.matmul %9, %10, %cst_10 {dimension_numbers = #tpu.dot_dimension_numbers<[1], [0], [0], [1], [0, 0, 1, 1], [], []>} : vector<16x64xbf16>, vector<64x32xbf16>, vector<16x32xf32> -> vector<16x32xf32>
    %13 = vector.broadcast %11 : vector<1x32xf32> to vector<16x32xf32>
    %14 = arith.addf %12, %13 : vector<16x32xf32>
    %cst_11 = arith.constant 0.000000e+00 : f32
    %15 = vector.broadcast %cst_11 : f32 to vector<16x32xf32>
    %16 = arith.maximumf %14, %15 : vector<16x32xf32>
    %17 = arith.truncf %16 : vector<16x32xf32> to vector<16x32xbf16>
    %c0_12 = arith.constant 0 : index
    %c0_13 = arith.constant 0 : index
    %18 = vector.load %arg6[%c0_12, %c0_13] : memref<32x128xbf16, #tpu.memory_space<vmem>>, vector<32x128xbf16>
    %c0_14 = arith.constant 0 : index
    %c0_15 = arith.constant 0 : index
    %19 = vector.load %arg7[%c0_14, %c0_15] : memref<1x128xf32, #tpu.memory_space<vmem>>, vector<1x128xf32>
    %cst_16 = arith.constant dense<0.000000e+00> : vector<16x128xf32>
    %20 = tpu.matmul %17, %18, %cst_16 {dimension_numbers = #tpu.dot_dimension_numbers<[1], [0], [0], [1], [0, 0, 1, 1], [], []>} : vector<16x32xbf16>, vector<32x128xbf16>, vector<16x128xf32> -> vector<16x128xf32>
    %21 = vector.broadcast %19 : vector<1x128xf32> to vector<16x128xf32>
    %22 = arith.addf %20, %21 : vector<16x128xf32>
    %23 = arith.truncf %22 : vector<16x128xf32> to vector<16x128xbf16>
    %c0_17 = arith.constant 0 : index
    %c0_18 = arith.constant 0 : index
    %24 = vector.load %arg8[%c0_17, %c0_18] : memref<16x128xbf16, #tpu.memory_space<vmem>>, vector<16x128xbf16>
    tpu.vector_store %arg8[%c0_17, %c0_18], %23 {strides = array<i32>} : memref<16x128xbf16, #tpu.memory_space<vmem>>, vector<16x128xbf16>,
    return
  }
  func.func @transform_0(%arg0: i32) -> (i32, i32) {
    %c0_i32 = arith.constant 0 : i32
    %c0_i32_0 = arith.constant 0 : i32
    return %arg0, %c0_i32 : i32, i32
  }
  func.func @transform_1(%arg0: i32) -> (i32, i32) {
    %c0_i32 = arith.constant 0 : i32
    %c0_i32_0 = arith.constant 0 : i32
    %c0_i32_1 = arith.constant 0 : i32
    return %c0_i32, %c0_i32_0 : i32, i32
  }
  func.func @transform_2(%arg0: i32) -> (i32, i32) {
    %c0_i32 = arith.constant 0 : i32
    %c0_i32_0 = arith.constant 0 : i32
    %c0_i32_1 = arith.constant 0 : i32
    return %c0_i32, %c0_i32_0 : i32, i32
  }
  func.func @transform_3(%arg0: i32) -> (i32, i32) {
    %c0_i32 = arith.constant 0 : i32
    %c0_i32_0 = arith.constant 0 : i32
    %c0_i32_1 = arith.constant 0 : i32
    return %c0_i32, %c0_i32_0 : i32, i32
  }
  func.func @transform_4(%arg0: i32) -> (i32, i32) {
    %c0_i32 = arith.constant 0 : i32
    %c0_i32_0 = arith.constant 0 : i32
    %c0_i32_1 = arith.constant 0 : i32
    return %c0_i32, %c0_i32_0 : i32, i32
  }
  func.func @transform_5(%arg0: i32) -> (i32, i32) {
    %c0_i32 = arith.constant 0 : i32
    %c0_i32_0 = arith.constant 0 : i32
    %c0_i32_1 = arith.constant 0 : i32
    return %c0_i32, %c0_i32_0 : i32, i32
  }
  func.func @transform_6(%arg0: i32) -> (i32, i32) {
    %c0_i32 = arith.constant 0 : i32
    %c0_i32_0 = arith.constant 0 : i32
    %c0_i32_1 = arith.constant 0 : i32
    return %c0_i32, %c0_i32_0 : i32, i32
  }
  func.func @transform_7(%arg0: i32) -> (i32, i32) {
    %c0_i32 = arith.constant 0 : i32
    %c0_i32_0 = arith.constant 0 : i32
    return %arg0, %c0_i32 : i32, i32
  }
}

</mosaic_0001>

<llo_original>
// kernel: tpu_custom_call.1
$region0: #{tpu_custom_call.1}
  #allocation0 [shape = 'u32[]', space=smem, size = 0x4, offset = 0x4, fixed_abs, tag = 'smem constant byte address 0x4 - core index']
  #allocation1 [shape = 'u32[144,128]{1,0:T(1,128)}', space=vmem, size = 0x12000, scoped, tag = 'internal scratch']
  %s0 = inlined_call_operand.vmem [shape: f32[64,32], index: 0, kind: input, shape index: {}]
  %s1 = inlined_call_operand.vmem [shape: bf16[32,64], index: 1, kind: input, shape index: {}]
  %s2 = inlined_call_operand.vmem [shape: f32[1,64], index: 2, kind: input, shape index: {}]
  %s3 = inlined_call_operand.vmem [shape: bf16[64,32], index: 3, kind: input, shape index: {}]
  %s4 = inlined_call_operand.vmem [shape: f32[1,32], index: 4, kind: input, shape index: {}]
  %s5 = inlined_call_operand.vmem [shape: bf16[32,128], index: 5, kind: input, shape index: {}]
  %s6 = inlined_call_operand.vmem [shape: f32[1,128], index: 6, kind: input, shape index: {}]
  %s7 = inlined_call_operand.hbm [shape: bf16[64,128], index: 7, kind: output, shape index: {}]
  %s8 = sld [smem:[#allocation0]]
  $region61: #{tpu_custom_call.1} parent=0
    _
  %s10 = ssub.s32 1, %s8
  %s11 = scalar_select 0, %s10, %s8
  $region1: #{tpu_custom_call.1} parent=0
    #allocation2 [shape = 'u8[8192]{0}', space=vmem, size = 0x2000, scoped, tag = 'output window, operand 0']
    #allocation3 [shape = 's32[2]{0}', space=sflag, size = 0x8, scoped, tag = 'scoped memory for tpu_custom_call.1']
    %12 = vsyncpa [#allocation3], 0
    %s13 = scalar_lea.sflag [#allocation3], 1
    %14 = vsyncpa %s13, 0
    loop: start=0, step=1, limit=6
    $region2: #{tpu_custom_call.1} parent=1 // loop_pre_header
      _
    $region3: #{tpu_custom_call.1} parent=1 // loop_header
      %s16 = sphi 0, %s20
      %p17 = scmp.ge.s32.totalorder %s16, 6
      %s26 = sphi 0, %s28
      %s29 = sphi 0, %s26
      %s30 = sphi 0, %s29
      %s46 = sphi 0, %s30
      %s50 = sphi 0, %s50
      %s52 = sphi 0, %s50
      %s53 = sphi 0, %s52
      %s67 = sphi 0, %s53
      %s71 = sphi 0, %s71
      %s73 = sphi 0, %s71
      %s74 = sphi 0, %s73
      %s88 = sphi 0, %s74
      %s92 = sphi 0, %s92
      %s94 = sphi 0, %s92
      %s95 = sphi 0, %s94
      %s109 = sphi 0, %s95
      %s113 = sphi 0, %s113
      %s115 = sphi 0, %s113
      %s116 = sphi 0, %s115
      %s130 = sphi 0, %s116
      %s134 = sphi 0, %s134
      %s136 = sphi 0, %s134
      %s137 = sphi 0, %s136
      %s151 = sphi 0, %s137
      %s155 = sphi 0, %s155
      %s157 = sphi 0, %s155
      %s158 = sphi 0, %s157
      %s172 = sphi 0, %s158
      %s178 = sphi 0, %s180
      %s181 = sphi 0, %s178
      %s182 = sphi 0, %s181
      %s198 = sphi 0, %s182
    $region4: #{tpu_custom_call.1} parent=1 // loop_header_branch
      %19 = sbr.rel (%p17) target = $region8
    $region5: #{tpu_custom_call.1} parent=1 // loop_body
      %s21 = ssub.s32 %s16, 1
      %s22 = ssub.s32 %s16, 2
      %s23 = sadd.s32 %s16, 1
      %s24 = ssub.s32 %s16, %s23
      %p25 = scmp.eq.s32.totalorder %s24, 0
      %s27 = sadd.s32 %s26, 1
      %s28 = scalar_select %p25, %s26, %s27
      %p31 = pneg %p25
      %p32 = scmp.eq.s32.totalorder %s16, 3
      %p33 = por %p31, %p32
      %p34 = scmp.ne.s32.totalorder %s26, %s29
      %p35 = scmp.eq.s32.totalorder %s16, 0
      %p36 = por %p34, %p35
      %p37 = scmp.ne.s32.totalorder %s26, %s29
      %p38 = scmp.eq.s32.totalorder %s21, 3
      %p39 = por %p37, %p38
      %p40 = scmp.ne.s32.totalorder %s29, %s30
      %p41 = scmp.eq.s32.totalorder %s21, 0
      %p42 = por %p40, %p41
      %p43 = scmp.ne.s32.totalorder %s29, %s30
      %p44 = scmp.eq.s32.totalorder %s22, 3
      %p45 = por %p43, %p44
      %p47 = scmp.ne.s32.totalorder %s30, %s46
      %p48 = scmp.eq.s32.totalorder %s22, 0
      %p49 = por %p47, %p48
      %s51 = sadd.s32 %s50, 1
      %p54 = scmp.eq.s32.totalorder %s16, 3
      %p55 = scmp.ne.s32.totalorder %s50, %s52
      %p56 = scmp.eq.s32.totalorder %s16, 0
      %p57 = por %p55, %p56
      %p58 = scmp.ne.s32.totalorder %s50, %s52
      %p59 = scmp.eq.s32.totalorder %s21, 3
      %p60 = por %p58, %p59
      %p61 = scmp.ne.s32.totalorder %s52, %s53
      %p62 = scmp.eq.s32.totalorder %s21, 0
      %p63 = por %p61, %p62
      %p64 = scmp.ne.s32.totalorder %s52, %s53
      %p65 = scmp.eq.s32.totalorder %s22, 3
      %p66 = por %p64, %p65
      %p68 = scmp.ne.s32.totalorder %s53, %s67
      %p69 = scmp.eq.s32.totalorder %s22, 0
      %p70 = por %p68, %p69
      %s72 = sadd.s32 %s71, 1
      %p75 = scmp.eq.s32.totalorder %s16, 3
      %p76 = scmp.ne.s32.totalorder %s71, %s73
      %p77 = scmp.eq.s32.totalorder %s16, 0
      %p78 = por %p76, %p77
      %p79 = scmp.ne.s32.totalorder %s71, %s73
      %p80 = scmp.eq.s32.totalorder %s21, 3
      %p81 = por %p79, %p80
      %p82 = scmp.ne.s32.totalorder %s73, %s74
      %p83 = scmp.eq.s32.totalorder %s21, 0
      %p84 = por %p82, %p83
      %p85 = scmp.ne.s32.totalorder %s73, %s74
      %p86 = scmp.eq.s32.totalorder %s22, 3
      %p87 = por %p85, %p86
      %p89 = scmp.ne.s32.totalorder %s74, %s88
      %p90 = scmp.eq.s32.totalorder %s22, 0
      %p91 = por %p89, %p90
      %s93 = sadd.s32 %s92, 1
      %p96 = scmp.eq.s32.totalorder %s16, 3
      %p97 = scmp.ne.s32.totalorder %s92, %s94
      %p98 = scmp.eq.s32.totalorder %s16, 0
      %p99 = por %p97, %p98
      %p100 = scmp.ne.s32.totalorder %s92, %s94
      %p101 = scmp.eq.s32.totalorder %s21, 3
      %p102 = por %p100, %p101
      %p103 = scmp.ne.s32.totalorder %s94, %s95
      %p104 = scmp.eq.s32.totalorder %s21, 0
      %p105 = por %p103, %p104
      %p106 = scmp.ne.s32.totalorder %s94, %s95
      %p107 = scmp.eq.s32.totalorder %s22, 3
      %p108 = por %p106, %p107
      %p110 = scmp.ne.s32.totalorder %s95, %s109
      %p111 = scmp.eq.s32.totalorder %s22, 0
      %p112 = por %p110, %p111
      %s114 = sadd.s32 %s113, 1
      %p117 = scmp.eq.s32.totalorder %s16, 3
      %p118 = scmp.ne.s32.totalorder %s113, %s115
      %p119 = scmp.eq.s32.totalorder %s16, 0
      %p120 = por %p118, %p119
      %p121 = scmp.ne.s32.totalorder %s113, %s115
      %p122 = scmp.eq.s32.totalorder %s21, 3
      %p123 = por %p121, %p122
      %p124 = scmp.ne.s32.totalorder %s115, %s116
      %p125 = scmp.eq.s32.totalorder %s21, 0
      %p126 = por %p124, %p125
      %p127 = scmp.ne.s32.totalorder %s115, %s116
      %p128 = scmp.eq.s32.totalorder %s22, 3
      %p129 = por %p127, %p128
      %p131 = scmp.ne.s32.totalorder %s116, %s130
      %p132 = scmp.eq.s32.totalorder %s22, 0
      %p133 = por %p131, %p132
      %s135 = sadd.s32 %s134, 1
      %p138 = scmp.eq.s32.totalorder %s16, 3
      %p139 = scmp.ne.s32.totalorder %s134, %s136
      %p140 = scmp.eq.s32.totalorder %s16, 0
      %p141 = por %p139, %p140
      %p142 = scmp.ne.s32.totalorder %s134, %s136
      %p143 = scmp.eq.s32.totalorder %s21, 3
      %p144 = por %p142, %p143
      %p145 = scmp.ne.s32.totalorder %s136, %s137
      %p146 = scmp.eq.s32.totalorder %s21, 0
      %p147 = por %p145, %p146
      %p148 = scmp.ne.s32.totalorder %s136, %s137
      %p149 = scmp.eq.s32.totalorder %s22, 3
      %p150 = por %p148, %p149
      %p152 = scmp.ne.s32.totalorder %s137, %s151
      %p153 = scmp.eq.s32.totalorder %s22, 0
      %p154 = por %p152, %p153
      %s156 = sadd.s32 %s155, 1
      %p159 = scmp.eq.s32.totalorder %s16, 3
      %p160 = scmp.ne.s32.totalorder %s155, %s157
      %p161 = scmp.eq.s32.totalorder %s16, 0
      %p162 = por %p160, %p161
      %p163 = scmp.ne.s32.totalorder %s155, %s157
      %p164 = scmp.eq.s32.totalorder %s21, 3
      %p165 = por %p163, %p164
      %p166 = scmp.ne.s32.totalorder %s157, %s158
      %p167 = scmp.eq.s32.totalorder %s21, 0
      %p168 = por %p166, %p167
      %p169 = scmp.ne.s32.totalorder %s157, %s158
      %p170 = scmp.eq.s32.totalorder %s22, 3
      %p171 = por %p169, %p170
      %p173 = scmp.ne.s32.totalorder %s158, %s172
      %p174 = scmp.eq.s32.totalorder %s22, 0
      %p175 = por %p173, %p174
      %s176 = ssub.s32 %s16, %s23
      %p177 = scmp.eq.s32.totalorder %s176, 0
      %s179 = sadd.s32 %s178, 1
      %s180 = scalar_select %p177, %s178, %s179
      %p183 = pneg %p177
      %p184 = scmp.eq.s32.totalorder %s16, 3
      %p185 = por %p183, %p184
      %p186 = scmp.ne.s32.totalorder %s178, %s181
      %p187 = scmp.eq.s32.totalorder %s16, 0
      %p188 = por %p186, %p187
      %p189 = scmp.ne.s32.totalorder %s178, %s181
      %p190 = scmp.eq.s32.totalorder %s21, 3
      %p191 = por %p189, %p190
      %p192 = scmp.ne.s32.totalorder %s181, %s182
      %p193 = scmp.eq.s32.totalorder %s21, 0
      %p194 = por %p192, %p193
      %p195 = scmp.ne.s32.totalorder %s181, %s182
      %p196 = scmp.eq.s32.totalorder %s22, 3
      %p197 = por %p195, %p196
      %p199 = scmp.ne.s32.totalorder %s182, %s198
      %p200 = scmp.eq.s32.totalorder %s22, 0
      %p201 = por %p199, %p200
      %p202 = scmp.le.s32.totalorder 1, %s16
      %p203 = scmp.lt.s32.totalorder %s16, 5
      %p204 = pnand %p202, %p203
      %p205 = pneg %p204
      // Predicated region
      $region9: #{tpu_custom_call.1} parent=5 // pred_check
        _
      $region10: #{tpu_custom_call.1} parent=5 // pred_check_branch
        %207 = sbr.rel (%p204) target = $region12
      $region11: #{tpu_custom_call.1} parent=5 // pred_region
        %s208 = ssub.s32 %s16, 1
        // Predicated region
        $region13: #{tpu_custom_call.1} parent=11 // pred_check
          %p209 = pneg %p63
        $region14: #{tpu_custom_call.1} parent=11 // pred_check_branch
          %211 = sbr.rel (%p209) target = $region16
        $region15: #{tpu_custom_call.1} parent=11 // pred_region
          _
        $region16: #{tpu_custom_call.1} parent=11 // pred_fallthru
          _
        // Predicated region
        $region17: #{tpu_custom_call.1} parent=11 // pred_check
          %p212 = pneg %p84
        $region18: #{tpu_custom_call.1} parent=11 // pred_check_branch
          %214 = sbr.rel (%p212) target = $region20
        $region19: #{tpu_custom_call.1} parent=11 // pred_region
          _
        $region20: #{tpu_custom_call.1} parent=11 // pred_fallthru
          _
        // Predicated region
        $region21: #{tpu_custom_call.1} parent=11 // pred_check
          %p215 = pneg %p105
        $region22: #{tpu_custom_call.1} parent=11 // pred_check_branch
          %217 = sbr.rel (%p215) target = $region24
        $region23: #{tpu_custom_call.1} parent=11 // pred_region
          _
        $region24: #{tpu_custom_call.1} parent=11 // pred_fallthru
          _
        // Predicated region
        $region25: #{tpu_custom_call.1} parent=11 // pred_check
          %p218 = pneg %p126
        $region26: #{tpu_custom_call.1} parent=11 // pred_check_branch
          %220 = sbr.rel (%p218) target = $region28
        $region27: #{tpu_custom_call.1} parent=11 // pred_region
          _
        $region28: #{tpu_custom_call.1} parent=11 // pred_fallthru
          _
        // Predicated region
        $region29: #{tpu_custom_call.1} parent=11 // pred_check
          %p221 = pneg %p147
        $region30: #{tpu_custom_call.1} parent=11 // pred_check_branch
          %223 = sbr.rel (%p221) target = $region32
        $region31: #{tpu_custom_call.1} parent=11 // pred_region
          _
        $region32: #{tpu_custom_call.1} parent=11 // pred_fallthru
          _
        // Predicated region
        $region33: #{tpu_custom_call.1} parent=11 // pred_check
          %p224 = pneg %p168
        $region34: #{tpu_custom_call.1} parent=11 // pred_check_branch
          %226 = sbr.rel (%p224) target = $region36
        $region35: #{tpu_custom_call.1} parent=11 // pred_region
          _
        $region36: #{tpu_custom_call.1} parent=11 // pred_fallthru
          _
      $region12: #{tpu_custom_call.1} parent=5 // pred_fallthru
        _
      %p227 = scmp.lt.s32.totalorder %s16, 4
      // Predicated region
      $region37: #{tpu_custom_call.1} parent=5 // pred_check
        %p228 = pneg %p227
      $region38: #{tpu_custom_call.1} parent=5 // pred_check_branch
        %230 = sbr.rel (%p228) target = $region40
      $region39: #{tpu_custom_call.1} parent=5 // pred_region
        // Predicated region
        $region41: #{tpu_custom_call.1} parent=39 // pred_check
          %p231 = pneg %p36
        $region42: #{tpu_custom_call.1} parent=39 // pred_check_branch
          %233 = sbr.rel (%p231) target = $region44
        $region43: #{tpu_custom_call.1} parent=39 // pred_region
          %s234 = smul.u32 2, %s16
          %p235 = scmp.lt.s32.totalorder %s234, 7
          %s236 = scalar_select %p235, %s234, 7
          %s237 = smul.addr %s236, 8
          %s238 = scalar_lea.vmem %s0, %s237
          %s239 = smul.u32 2, %s16
        $region44: #{tpu_custom_call.1} parent=39 // pred_fallthru
          _
      $region40: #{tpu_custom_call.1} parent=5 // pred_fallthru
        _
      %p240 = scmp.le.s32.totalorder 1, %s16
      %p241 = scmp.lt.s32.totalorder %s16, 5
      %p242 = pnand %p240, %p241
      %p243 = pneg %p242
      // Predicated region
      $region45: #{tpu_custom_call.1} parent=5 // pred_check
        _
      $region46: #{tpu_custom_call.1} parent=5 // pred_check_branch
        %245 = sbr.rel (%p242) target = $region48
      $region47: #{tpu_custom_call.1} parent=5 // pred_region
        %s246 = ssub.s32 %s16, 1
        %s247 = smul.u32 2, %s21
        %p248 = scmp.lt.s32.totalorder %s247, 7
        %s249 = scalar_select %p248, %s247, 7
        %s250 = smul.addr %s249, 8
        %s251 = scalar_lea.vmem %s0, %s250
        %p252 = pneg %p42
        %p253 = pneg %p39
        %p254 = pneg %p63
        %p255 = pneg %p60
        %p256 = pneg %p84
        %p257 = pneg %p81
        %p258 = pneg %p105
        %p259 = pneg %p102
        %p260 = pneg %p126
        %p261 = pneg %p123
        %p262 = pneg %p147
        %p263 = pneg %p144
        %p264 = pneg %p168
        %p265 = pneg %p165
        %p266 = pneg %p194
        %p267 = pneg %p191
        %s268 = sand.u32 %s181, 1
        %s269 = scalar_lea.sflag [#allocation3], %s268
        %s270 = sand.u32 %s181, 1
        %s271 = smul.addr %s270, 8
        %s272 = scalar_lea.vmem [#allocation2], %s271
        %s273 = smul.u32 2, %s21
        %p274 = scmp.lt.s32.totalorder %s273, 7
        %s275 = scalar_select %p274, %s273, 7
        %s276 = smul.addr %s275, 8
        %s277 = scalar_lea.vmem %s0, %s276
        %s278 = smul.u32 2, %s21
        %s279 = smul.u32 2, %s21
        %v281 = vld [vmem:[%s277] sm:$0xff]
        %v282 = vld [vmem:[%s277 + $0x8] sm:$0xff]
        %v283 = vpack.c.bf16 %v282, %v281
        %v284 = vld [vmem:[%s1] sm:$0xf]
        %v285 = vld [vmem:[%s1 + $0x4] sm:$0xf]
        %v286 = vld [vmem:[%s1 + $0x8] sm:$0xf]
        %v287 = vld [vmem:[%s1 + $0xc] sm:$0xf]
        %v288 = vld [vmem:[%s2] sm:$0x1]
        %v290 = vlaneseq
        %v291 = vshrl.u32 %v290, 7
        %v292 = vsub.s32 0, %v291
        %v293 = vrot.slane %v288, %v292
        %v299 = vunpack.c.l.b16 %v284
        %v300 = vunpack.c.l.b16 %v285
        %v301 = vunpack.c.l.b16 %v286
        %v302 = vunpack.c.l.b16 %v287
        %v303 = vpack.c.b16 %v300, %v299
        %v304 = vpack.c.b16 %v302, %v301
        %vm307 = vcmask 261120
        %v309 = vsel %vm307, %v283, 0
        %311 = vmatprep.subr.bf16.mxu0 0
        %312 = vmatpush1.bf16.msra.mxu0 %v303
        %313 = vmatprep.subr.bf16.mxu0 0
        %314 = vmatpush1.bf16.msra.mxu0 %v304
        %315 = vmatprep.subr.bf16.mxu0 0
        %316 = vmatpush1.bf16.msra.mxu0 0
        %317 = vmatprep.subr.bf16.mxu0 0
        %318 = vmatpush1.bf16.msra.mxu0 0
        %319 = vmatprep.subr.bf16.mxu0 0
        %320 = vmatpush1.bf16.msra.mxu0 0
        %321 = vmatprep.subr.bf16.mxu0 0
        %322 = vmatpush1.bf16.msra.mxu0 0
        %323 = vmatprep.subr.bf16.mxu0 0
        %324 = vmatpush1.bf16.msra.mxu0 0
        %325 = vmatprep.subr.bf16.mxu0 0
        %326 = vmatpush1.bf16.msra.mxu0 0
        %327 = vmatprep.subr.bf16.mxu0 0
        %328 = vmatpush1.bf16.msra.mxu0 0
        %329 = vmatprep.subr.bf16.mxu0 0
        %330 = vmatpush1.bf16.msra.mxu0 0
        %331 = vmatprep.subr.bf16.mxu0 0
        %332 = vmatpush1.bf16.msra.mxu0 0
        %333 = vmatprep.subr.bf16.mxu0 0
        %334 = vmatpush1.bf16.msra.mxu0 0
        %335 = vmatprep.subr.bf16.mxu0 0
        %336 = vmatpush1.bf16.msra.mxu0 0
        %337 = vmatprep.subr.bf16.mxu0 0
        %338 = vmatpush1.bf16.msra.mxu0 0
        %339 = vmatprep.subr.bf16.mxu0 0
        %340 = vmatpush1.bf16.msra.mxu0 0
        %341 = vmatprep.subr.bf16.mxu0 0
        %342 = vmatpush1.bf16.msra.mxu0 0
        %343 = vmatprep.mubr.bf16.mxu0 0
        %344 = vmatmul.mubr.bf16.gmra.mrb[0].mxu0 %v309
        %v345 = vpop.f32.mrb[0].mxu0
        %v346 = vadd.f32 %v293, %v345
        %v347 = vpop.f32.mrb[0].mxu0
        %v348 = vpop.f32.mrb[0].mxu0
        %v349 = vadd.f32 %v293, %v348
        %v350 = vpop.f32.mrb[0].mxu0
        %351 = vdwg.mxu0
        %v352 = vmax.f32 %v346, 0.0
        %v353 = vmax.f32 %v349, 0.0
        %v354 = vpack.c.bf16 %v353, %v352
        %v355 = vld [vmem:[%s3] sm:$0xf]
        %v356 = vld [vmem:[%s3 + $0x4] sm:$0xf]
        %v357 = vld [vmem:[%s3 + $0x8] sm:$0xf]
        %v358 = vld [vmem:[%s3 + $0xc] sm:$0xf]
        %v359 = vld [vmem:[%s3 + $0x10] sm:$0xf]
        %v360 = vld [vmem:[%s3 + $0x14] sm:$0xf]
        %v361 = vld [vmem:[%s3 + $0x18] sm:$0xf]
        %v362 = vld [vmem:[%s3 + $0x1c] sm:$0xf]
        %v363 = vld [vmem:[%s4] sm:$0x1]
        %v365 = vlaneseq
        %v366 = vshrl.u32 %v365, 7
        %v367 = vsub.s32 0, %v366
        %v368 = vrot.slane %v363, %v367
        %v378 = vunpack.c.l.b16 %v355
        %v379 = vunpack.c.l.b16 %v356
        %v380 = vunpack.c.l.b16 %v357
        %v381 = vunpack.c.l.b16 %v358
        %v382 = vunpack.c.l.b16 %v359
        %v383 = vunpack.c.l.b16 %v360
        %v384 = vunpack.c.l.b16 %v361
        %v385 = vunpack.c.l.b16 %v362
        %v386 = vpack.c.b16 %v379, %v378
        %v387 = vpack.c.b16 %v381, %v380
        %v388 = vpack.c.b16 %v383, %v382
        %v389 = vpack.c.b16 %v385, %v384
        %vm394 = vcmask 523264
        %v396 = vsel %vm394, %v354, 0
        %398 = vmatprep.subr.bf16.mxu0 0
        %399 = vmatpush1.bf16.msra.mxu0 %v386
        %400 = vmatprep.subr.bf16.mxu0 0
        %401 = vmatpush1.bf16.msra.mxu0 %v387
        %402 = vmatprep.subr.bf16.mxu0 0
        %403 = vmatpush1.bf16.msra.mxu0 %v388
        %404 = vmatprep.subr.bf16.mxu0 0
        %405 = vmatpush1.bf16.msra.mxu0 %v389
        %406 = vmatprep.subr.bf16.mxu0 0
        %407 = vmatpush1.bf16.msra.mxu0 0
        %408 = vmatprep.subr.bf16.mxu0 0
        %409 = vmatpush1.bf16.msra.mxu0 0
        %410 = vmatprep.subr.bf16.mxu0 0
        %411 = vmatpush1.bf16.msra.mxu0 0
        %412 = vmatprep.subr.bf16.mxu0 0
        %413 = vmatpush1.bf16.msra.mxu0 0
        %414 = vmatprep.subr.bf16.mxu0 0
        %415 = vmatpush1.bf16.msra.mxu0 0
        %416 = vmatprep.subr.bf16.mxu0 0
        %417 = vmatpush1.bf16.msra.mxu0 0
        %418 = vmatprep.subr.bf16.mxu0 0
        %419 = vmatpush1.bf16.msra.mxu0 0
        %420 = vmatprep.subr.bf16.mxu0 0
        %421 = vmatpush1.bf16.msra.mxu0 0
        %422 = vmatprep.subr.bf16.mxu0 0
        %423 = vmatpush1.bf16.msra.mxu0 0
        %424 = vmatprep.subr.bf16.mxu0 0
        %425 = vmatpush1.bf16.msra.mxu0 0
        %426 = vmatprep.subr.bf16.mxu0 0
        %427 = vmatpush1.bf16.msra.mxu0 0
        %428 = vmatprep.subr.bf16.mxu0 0
        %429 = vmatpush1.bf16.msra.mxu0 0
        %430 = vmatprep.mubr.bf16.mxu0 0
        %431 = vmatmul.mubr.bf16.gmra.mrb[0].mxu0 %v396
        %v432 = vpop.f32.mrb[0].mxu0
        %v433 = vadd.f32 %v368, %v432
        %v434 = vpop.f32.mrb[0].mxu0
        %v435 = vpop.f32.mrb[0].mxu0
        %v436 = vadd.f32 %v368, %v435
        %v437 = vpop.f32.mrb[0].mxu0
        %438 = vdwg.mxu0
        %v439 = vmax.f32 %v433, 0.0
        %v440 = vmax.f32 %v436, 0.0
        %v441 = vpack.c.bf16 %v440, %v439
        %v442 = vld [vmem:[%s5] sm:$0xf]
        %v443 = vld [vmem:[%s5 + $0x4] sm:$0xf]
        %v444 = vld [vmem:[%s5 + $0x8] sm:$0xf]
        %v445 = vld [vmem:[%s5 + $0xc] sm:$0xf]
        %v446 = vld [vmem:[%s6] sm:$0x1]
        %v448 = vlaneseq
        %v449 = vshrl.u32 %v448, 7
        %v450 = vsub.s32 0, %v449
        %v451 = vrot.slane %v446, %v450
        %v457 = vunpack.c.l.b16 %v442
        %v458 = vunpack.c.l.b16 %v443
        %v459 = vunpack.c.l.b16 %v444
        %v460 = vunpack.c.l.b16 %v445
        %v461 = vpack.c.b16 %v458, %v457
        %v462 = vpack.c.b16 %v460, %v459
        %v466 = vsel %vm307, %v441, 0
        %468 = vmatprep.subr.bf16.mxu0 0
        %469 = vmatpush1.bf16.msra.mxu0 %v461
        %470 = vmatprep.subr.bf16.mxu0 0
        %471 = vmatpush1.bf16.msra.mxu0 %v462
        %472 = vmatprep.subr.bf16.mxu0 0
        %473 = vmatpush1.bf16.msra.mxu0 0
        %474 = vmatprep.subr.bf16.mxu0 0
        %475 = vmatpush1.bf16.msra.mxu0 0
        %476 = vmatprep.subr.bf16.mxu0 0
        %477 = vmatpush1.bf16.msra.mxu0 0
        %478 = vmatprep.subr.bf16.mxu0 0
        %479 = vmatpush1.bf16.msra.mxu0 0
        %480 = vmatprep.subr.bf16.mxu0 0
        %481 = vmatpush1.bf16.msra.mxu0 0
        %482 = vmatprep.subr.bf16.mxu0 0
        %483 = vmatpush1.bf16.msra.mxu0 0
        %484 = vmatprep.subr.bf16.mxu0 0
        %485 = vmatpush1.bf16.msra.mxu0 0
        %486 = vmatprep.subr.bf16.mxu0 0
        %487 = vmatpush1.bf16.msra.mxu0 0
        %488 = vmatprep.subr.bf16.mxu0 0
        %489 = vmatpush1.bf16.msra.mxu0 0
        %490 = vmatprep.subr.bf16.mxu0 0
        %491 = vmatpush1.bf16.msra.mxu0 0
        %492 = vmatprep.subr.bf16.mxu0 0
        %493 = vmatpush1.bf16.msra.mxu0 0
        %494 = vmatprep.subr.bf16.mxu0 0
        %495 = vmatpush1.bf16.msra.mxu0 0
        %496 = vmatprep.subr.bf16.mxu0 0
        %497 = vmatpush1.bf16.msra.mxu0 0
        %498 = vmatprep.subr.bf16.mxu0 0
        %499 = vmatpush1.bf16.msra.mxu0 0
        %500 = vmatprep.mubr.bf16.mxu0 0
        %501 = vmatmul.mubr.bf16.gmra.mrb[0].mxu0 %v466
        %v502 = vpop.f32.mrb[0].mxu0
        %v503 = vadd.f32 %v451, %v502
        %v504 = vpop.f32.mrb[0].mxu0
        %v505 = vpop.f32.mrb[0].mxu0
        %v506 = vadd.f32 %v451, %v505
        %v507 = vpop.f32.mrb[0].mxu0
        %508 = vdwg.mxu0
        %v509 = vpack.c.bf16 %v506, %v503
        %v511 = vunpack.c.l.b16 %v509
        %v512 = vunpack.c.h.b16 %v509
        %v513 = vpack.c.b16 %v511, %v511
        %v514 = vpack.c.b16 %v512, %v512
        %517 = vst [vmem:[%s272] sm:$0xf] %v513
        %518 = vst [vmem:[%s272 + $0x4] sm:$0xf] %v514
        %s519 = sand.u32 %s181, 1
        %s520 = scalar_lea.sflag [#allocation3], %s519
        %s521 = sand.u32 %s181, 1
        %s522 = smul.addr %s521, 8
        %s523 = scalar_lea.vmem [#allocation2], %s522
        // Predicated region
        $region49: #{tpu_custom_call.1} parent=47 // pred_check
          %p524 = pneg %p191
        $region50: #{tpu_custom_call.1} parent=47 // pred_check_branch
          %526 = sbr.rel (%p524) target = $region52
        $region51: #{tpu_custom_call.1} parent=47 // pred_region
          %s527 = smul.u32 2, %s21
          %s529 = ssub.s32 128, 128
          %530 = vsyncadd %s520, %s529
          %s531 = smul.addr %s527, 64
          %s532 = scalar_lea.hbm %s7, %s531
          %s533 = sshll.u32 %s523, 4
          %s534 = int_to_ptr.vmem [resolvable:$true] %s533
          %539 = dma.vmem_to_hbm [thread:$0]  %s534, 128, %s532, %s520, 64, 64, 4
        $region52: #{tpu_custom_call.1} parent=47 // pred_fallthru
          _
      $region48: #{tpu_custom_call.1} parent=5 // pred_fallthru
        _
      %p540 = scmp.le.s32.totalorder 2, %s16
      // Predicated region
      $region53: #{tpu_custom_call.1} parent=5 // pred_check
        %p541 = pneg %p540
      $region54: #{tpu_custom_call.1} parent=5 // pred_check_branch
        %543 = sbr.rel (%p541) target = $region56
      $region55: #{tpu_custom_call.1} parent=5 // pred_region
        %s544 = ssub.s32 %s16, 2
        // Predicated region
        $region57: #{tpu_custom_call.1} parent=55 // pred_check
          %p545 = pneg %p197
        $region58: #{tpu_custom_call.1} parent=55 // pred_check_branch
          %547 = sbr.rel (%p545) target = $region60
        $region59: #{tpu_custom_call.1} parent=55 // pred_region
          %s548 = sand.u32 %s182, 1
          %s549 = scalar_lea.sflag [#allocation3], %s548
          %s550 = sand.u32 %s182, 1
          %s551 = smul.addr %s550, 8
          %s552 = scalar_lea.vmem [#allocation2], %s551
          %553 = dma.done %s549, 128
        $region60: #{tpu_custom_call.1} parent=55 // pred_fallthru
          _
      $region56: #{tpu_custom_call.1} parent=5 // pred_fallthru
        _
    $region6: #{tpu_custom_call.1} parent=1 // loop_footer
      %s20 = sadd.s32 1, %s16
    $region7: #{tpu_custom_call.1} parent=1 // loop_footer_branch
      %15 = sbr.rel target = $region3
    $region8: #{tpu_custom_call.1} parent=1 // loop_exit
      _
    %554 = vsyncpa [#allocation3], 1
    %s555 = scalar_lea.sflag [#allocation3], 1
    %556 = vsyncpa %s555, 1

</llo_original>
